<compile_context>
chip_gen: v5e
topology: v5e:2x2
jax: 0.10.0
libtpu: 0.0.40
codegen_flags: <defaults>
</compile_context>

<pallas_src>
import jax
import jax.numpy as jnp
from jax.experimental import pallas as pl
from jax.experimental.pallas import tpu as pltpu


_LANES = 128


# ---------------------------------------------------------------------------
# Pass 1: deg = adj.sum(-1) (K-tiled, int32 VPU accumulator),
#         norm = rsqrt(1 + deg), xn = bf16(norm * x).
# ---------------------------------------------------------------------------
def _norm_xn_kernel(adj_ref, x_ref, xn_ref, norm_ref, deg_acc):
    k = pl.program_id(1)

    @pl.when(k == 0)
    def _():
        deg_acc[...] = jnp.zeros_like(deg_acc)

    tk = adj_ref.shape[1]
    if tk % _LANES == 0:
        # 128-lane chunks accumulated with plain VPU adds into a (tm, 128) int32
        # accumulator; the single cross-lane reduce happens only at k == last.
        partial = deg_acc[...]
        for c in range(tk // _LANES):
            partial = partial + adj_ref[:, c * _LANES:(c + 1) * _LANES].astype(jnp.int32)
        deg_acc[...] = partial
    else:
        # TODO(synk): tiny-N fallback (tk < 128) uses a per-step cross-lane reduce.
        deg_acc[:, 0:1] = deg_acc[:, 0:1] + jnp.sum(
            adj_ref[...].astype(jnp.int32), axis=-1, keepdims=True)

    @pl.when(k == pl.num_programs(1) - 1)
    def _():
        deg = jnp.sum(deg_acc[...], axis=-1, keepdims=True).astype(jnp.float32)
        norm = jax.lax.rsqrt(1.0 + deg)                        # (tm, 1) f32
        norm_ref[...] = norm
        xn_ref[...] = (norm * x_ref[...]).astype(xn_ref.dtype)  # bf16 xn tile


# ---------------------------------------------------------------------------
# Pass 2: out = norm * (adj @ xn + norm * x), K-tiled bf16 MXU matmul with an
# f32 VMEM accumulator (init/finalize via pl.when).
# ---------------------------------------------------------------------------
def _gcn_kernel(adj_ref, xn_col_ref, x_row_ref, norm_ref, out_ref, acc_ref):
    k = pl.program_id(1)

    @pl.when(k == 0)
    def _():
        acc_ref[...] = jnp.zeros_like(acc_ref)

    # bf16 x bf16 on the MXU (0/1 adjacency is exact in bf16), f32 accumulation.
    acc_ref[...] += jnp.dot(
        adj_ref[...].astype(jnp.bfloat16),
        xn_col_ref[...],
        preferred_element_type=jnp.float32,
    )

    @pl.when(k == pl.num_programs(1) - 1)
    def _():
        norm = norm_ref[...]                                    # (tm, 1) f32
        # Residual xn_row = norm * x_row kept in f32 (x row traffic is only O(N*D)).
        out_ref[...] = (
            norm * (acc_ref[...] + norm * x_row_ref[...])
        ).astype(out_ref.dtype)


def _estimate_vmem_bytes(tm, tk, tk_deg, D, out_bytes):
    """Conservative per-pass VMEM footprint (double-buffered inputs/outputs + scratch)."""
    lane_pad = _LANES
    p1 = 2 * (tm * tk_deg            # adj int8 tile
              + tm * D * 4           # x row tile (f32)
              + tm * D * 2           # xn out tile (bf16)
              + tm * lane_pad * 4)   # norm out tile (lane-padded)
    p1 += tm * lane_pad * 4          # deg accumulator (int32)
    p2 = 2 * (tm * tk                # adj int8 tile
              + tk * D * 2           # xn column tile (bf16)
              + tm * D * 4           # x row tile (f32)
              + tm * lane_pad * 4    # norm row tile (lane-padded)
              + tm * D * out_bytes)  # output tile
    p2 += tm * D * 4                 # f32 accumulator
    return max(p1, p2)


def pure_conv_gcn(x, adj, deg=None, *, tm=512, tk=2048, tk_deg=4096,
                  vmem_limit_bytes=None):
    """PureConv(indim=outdim, aggr='gcn') forward.

    x:   (N, D) float32 node features.
    adj: (N, N) dense 0/1 adjacency (row i = neighbors of i).  Streamed as int8,
         so only unweighted 0/1 adjacencies are represented exactly.
    deg: optional precomputed (N,) degrees (= adj.sum(-1)); if given, the extra
         adjacency read that only computes degrees (pass 1) is skipped.
    """
    N, D = x.shape
    assert adj.shape == (N, N)

    # 1 byte/element adjacency stream (fp8 e4m3 would be the equivalent on v7x).
    if adj.dtype != jnp.int8:
        adj = adj.astype(jnp.int8)

    tm = min(tm, N)
    tk = min(tk, N)
    tk_deg = min(tk_deg, N)
    # Keep >= 2 row tiles so the 'parallel' axis feeds both v7x TensorCores.
    if N // tm < 2 and N % 2 == 0 and (N // 2) % 32 == 0:
        tm = N // 2

    assert N % tm == 0 and N % tk == 0 and N % tk_deg == 0, (
        "N must be divisible by the tile sizes")
    # TODO(synk): cdiv-based grid + masking for ragged N.
    assert tm % 32 == 0, "int8 adjacency tiles need tm to be a multiple of 32"
    for t in (tk, tk_deg):
        assert t == N or t % _LANES == 0, "adjacency lane tiles must be multiples of 128"

    out_bytes = jnp.dtype(x.dtype).itemsize
    if vmem_limit_bytes is None:
        est = _estimate_vmem_bytes(tm, tk, tk_deg, D, out_bytes)
        # 2x headroom, but never above v7x's 64 MiB physical VMEM per TensorCore.
        vmem_limit_bytes = int(min(max(2 * est, 32 * 1024 * 1024), 64 * 1024 * 1024))

    cparams = pltpu.CompilerParams(
        dimension_semantics=("parallel", "arbitrary"),
        vmem_limit_bytes=vmem_limit_bytes,
    )

    if deg is None:
        # ---- Pass 1: norm = rsqrt(1 + adj.sum(-1)), xn = bf16(norm * x). ----
        xn, norm = pl.pallas_call(
            _norm_xn_kernel,
            out_shape=(
                jax.ShapeDtypeStruct((N, D), jnp.bfloat16),
                jax.ShapeDtypeStruct((N, 1), jnp.float32),
            ),
            grid_spec=pltpu.PrefetchScalarGridSpec(
                num_scalar_prefetch=0,
                grid=(N // tm, N // tk_deg),
                in_specs=[
                    pl.BlockSpec((tm, tk_deg), lambda i, k: (i, k)),  # adj tile (int8)
                    pl.BlockSpec((tm, D), lambda i, k: (i, 0)),       # x row tile (f32)
                ],
                out_specs=[
                    pl.BlockSpec((tm, D), lambda i, k: (i, 0)),       # xn row tile (bf16)
                    pl.BlockSpec((tm, 1), lambda i, k: (i, 0)),       # norm row tile
                ],
                scratch_shapes=[pltpu.VMEM((tm, _LANES), jnp.int32)],
            ),
            compiler_params=cparams,
        )(adj, x)
    else:
        # Degrees supplied at graph-build time: skip the extra N^2 adjacency read.
        # (Tiny O(N*D) elementwise prep; left to XLA.)
        norm = jax.lax.rsqrt(1.0 + deg.astype(jnp.float32)).reshape(N, 1)
        xn = (norm * x).astype(jnp.bfloat16)

    # ---- Pass 2: out = norm * (adj @ xn + norm * x). ----
    # If profiling ever shows exposed adjacency DMA, add
    # pipeline_mode=pl.Buffered(3) on the adj BlockSpec (ample VMEM headroom).
    out = pl.pallas_call(
        _gcn_kernel,
        out_shape=jax.ShapeDtypeStruct((N, D), x.dtype),
        grid_spec=pltpu.PrefetchScalarGridSpec(
            num_scalar_prefetch=0,
            grid=(N // tm, N // tk),
            in_specs=[
                pl.BlockSpec((tm, tk), lambda i, k: (i, k)),  # adj tile (int8)
                pl.BlockSpec((tk, D), lambda i, k: (k, 0)),   # xn column tile (bf16)
                pl.BlockSpec((tm, D), lambda i, k: (i, 0)),   # x row tile (residual, f32)
                pl.BlockSpec((tm, 1), lambda i, k: (i, 0)),   # norm row tile (f32)
            ],
            out_specs=pl.BlockSpec((tm, D), lambda i, k: (i, 0)),
            scratch_shapes=[pltpu.VMEM((tm, D), jnp.float32)],
        ),
        compiler_params=cparams,
    )(adj, xn, x, norm)
    return out


def _reference(x, adj):
    adj = adj.astype(jnp.float32)
    norm = jax.lax.rsqrt(1.0 + jnp.sum(adj, axis=-1)).reshape(-1, 1)
    xn = norm * x
    return norm * (adj @ xn + xn)


if __name__ == "__main__":
    N, D = 256, 128  # nodes, feature dim (indim == outdim, lin = Identity)
    key = jax.random.PRNGKey(0)
    k_adj, k_x = jax.random.split(key)

    # Deterministic synthetic graph: sparse-ish 0/1 adjacency (exact in int8/bf16).
    adj = (jax.random.uniform(k_adj, (N, N)) < 0.1).astype(jnp.float32)
    x = jax.random.normal(k_x, (N, D), dtype=jnp.float32)

    ref = _reference(x, adj)

    # 1) Default (large, clamped) tiles; tm auto-shrunk to keep 2 row tiles.
    out_default = jax.block_until_ready(pure_conv_gcn(x, adj))
    # 2) Small tiles: exercises a real (2, 2) grid with K-axis accumulation.
    out_tiled = jax.block_until_ready(
        pure_conv_gcn(x, adj, tm=128, tk=128, tk_deg=128))
    # 3) Precomputed-degree path: skips the degree pass entirely.
    out_deg = jax.block_until_ready(
        pure_conv_gcn(x, adj, deg=jnp.sum(adj, axis=-1)))

    # bf16 MXU path: allclose-level agreement with the f32 reference (not bit-identical).
    for out in (out_default, out_tiled, out_deg):
        assert out.shape == (N, D)
        assert jnp.allclose(out, ref, atol=1e-2, rtol=1e-2), (
            float(jnp.max(jnp.abs(out - ref))))

    print("KERNEL_OK")
</pallas_src>

<mosaic_0001>
module attributes {stable_mosaic.version = 11 : i64} {
  func.func @_norm_xn_kernel(%arg0: i32, %arg1: i32, %arg2: memref<128x256xi8, #tpu.memory_space<vmem>>, %arg3: memref<128x128xf32, #tpu.memory_space<vmem>>, %arg4: memref<128x128xbf16, #tpu.memory_space<vmem>>, %arg5: memref<128x1xf32, #tpu.memory_space<vmem>>, %arg6: memref<128x128xi32, #tpu.memory_space<vmem>>) attributes {dimension_semantics = [#tpu.dimension_semantics<parallel>, #tpu.dimension_semantics<arbitrary>], iteration_bounds = array<i64: 2, 1>, scalar_prefetch = 0 : i64, scratch_operands = 1 : i64, tpu.core_type = #tpu.core_type<tc>, window_params = [{transform_indices = @transform_0, window_bounds = array<i64: 128, 256>}, {transform_indices = @transform_1, window_bounds = array<i64: 128, 128>}, {transform_indices = @transform_2, window_bounds = array<i64: 128, 128>}, {transform_indices = @transform_3, window_bounds = array<i64: 128, 1>}]} {
    %c0_i32 = arith.constant 0 : i32
    %0 = arith.cmpi eq, %arg1, %c0_i32 : i32
    %1 = arith.extui %0 : i1 to i32
    %c0_i32_0 = arith.constant 0 : i32
    %2 = arith.cmpi ne, %1, %c0_i32_0 : i32
    scf.if %2 {
      %c0_i32_9 = arith.constant 0 : i32
      %14 = vector.broadcast %c0_i32_9 : i32 to vector<128x128xi32>
      %c0_10 = arith.constant 0 : index
      %c0_11 = arith.constant 0 : index
      %15 = vector.load %arg6[%c0_10, %c0_11] : memref<128x128xi32, #tpu.memory_space<vmem>>, vector<128x128xi32>
      tpu.vector_store %arg6[%c0_10, %c0_11], %14 {strides = array<i32>} : memref<128x128xi32, #tpu.memory_space<vmem>>, vector<128x128xi32>,
    } else {
    }
    %c0 = arith.constant 0 : index
    %c0_1 = arith.constant 0 : index
    %3 = vector.load %arg6[%c0, %c0_1] : memref<128x128xi32, #tpu.memory_space<vmem>>, vector<128x128xi32>
    %c0_2 = arith.constant 0 : index
    %c0_3 = arith.constant 0 : index
    %4 = vector.load %arg2[%c0_2, %c0_3] : memref<128x256xi8, #tpu.memory_space<vmem>>, vector<128x128xi8>
    %5 = arith.extsi %4 : vector<128x128xi8> to vector<128x128xi32>
    %6 = arith.addi %3, %5 : vector<128x128xi32>
    %c0_4 = arith.constant 0 : index
    %c128 = arith.constant 128 : index
    %7 = vector.load %arg2[%c0_4, %c128] : memref<128x256xi8, #tpu.memory_space<vmem>>, vector<128x128xi8>
    %8 = arith.extsi %7 : vector<128x128xi8> to vector<128x128xi32>
    %9 = arith.addi %6, %8 : vector<128x128xi32>
    %c0_5 = arith.constant 0 : index
    %c0_6 = arith.constant 0 : index
    %10 = vector.load %arg6[%c0_5, %c0_6] : memref<128x128xi32, #tpu.memory_space<vmem>>, vector<128x128xi32>
    tpu.vector_store %arg6[%c0_5, %c0_6], %9 {strides = array<i32>} : memref<128x128xi32, #tpu.memory_space<vmem>>, vector<128x128xi32>,
    %c0_i32_7 = arith.constant 0 : i32
    %11 = arith.cmpi eq, %arg1, %c0_i32_7 : i32
    %12 = arith.extui %11 : i1 to i32
    %c0_i32_8 = arith.constant 0 : i32
    %13 = arith.cmpi ne, %12, %c0_i32_8 : i32
    scf.if %13 {
      %c0_9 = arith.constant 0 : index
      %c0_10 = arith.constant 0 : index
      %14 = vector.load %arg6[%c0_9, %c0_10] : memref<128x128xi32, #tpu.memory_space<vmem>>, vector<128x128xi32>
      %cst = arith.constant dense<0> : vector<128xi32>
      %15 = vector.multi_reduction <add>, %14, %cst [1] : vector<128x128xi32> to vector<128xi32>
      %16 = vector.shape_cast %15 : vector<128xi32> to vector<128x1xi32>
      %17 = arith.sitofp %16 : vector<128x1xi32> to vector<128x1xf32>
      %cst_11 = arith.constant 1.000000e+00 : f32
      %18 = vector.broadcast %cst_11 : f32 to vector<128x1xf32>
      %19 = arith.addf %18, %17 : vector<128x1xf32>
      %20 = math.rsqrt %19 : vector<128x1xf32>
      %c0_12 = arith.constant 0 : index
      %c0_13 = arith.constant 0 : index
      %21 = vector.load %arg5[%c0_12, %c0_13] : memref<128x1xf32, #tpu.memory_space<vmem>>, vector<128x1xf32>
      tpu.vector_store %arg5[%c0_12, %c0_13], %20 {strides = array<i32>} : memref<128x1xf32, #tpu.memory_space<vmem>>, vector<128x1xf32>,
      %c0_14 = arith.constant 0 : index
      %c0_15 = arith.constant 0 : index
      %22 = vector.load %arg3[%c0_14, %c0_15] : memref<128x128xf32, #tpu.memory_space<vmem>>, vector<128x128xf32>
      %23 = vector.broadcast %20 : vector<128x1xf32> to vector<128x128xf32>
      %24 = arith.mulf %23, %22 : vector<128x128xf32>
      %25 = arith.truncf %24 : vector<128x128xf32> to vector<128x128xbf16>
      %c0_16 = arith.constant 0 : index
      %c0_17 = arith.constant 0 : index
      %26 = vector.load %arg4[%c0_16, %c0_17] : memref<128x128xbf16, #tpu.memory_space<vmem>>, vector<128x128xbf16>
      tpu.vector_store %arg4[%c0_16, %c0_17], %25 {strides = array<i32>} : memref<128x128xbf16, #tpu.memory_space<vmem>>, vector<128x128xbf16>,
    } else {
    }
    return
  }
  func.func @transform_0(%arg0: i32, %arg1: i32) -> (i32, i32) {
    %c0_i32 = arith.constant 0 : i32
    return %arg0, %arg1 : i32, i32
  }
  func.func @transform_1(%arg0: i32, %arg1: i32) -> (i32, i32) {
    %c0_i32 = arith.constant 0 : i32
    %c0_i32_0 = arith.constant 0 : i32
    return %arg0, %c0_i32 : i32, i32
  }
  func.func @transform_2(%arg0: i32, %arg1: i32) -> (i32, i32) {
    %c0_i32 = arith.constant 0 : i32
    %c0_i32_0 = arith.constant 0 : i32
    return %arg0, %c0_i32 : i32, i32
  }
  func.func @transform_3(%arg0: i32, %arg1: i32) -> (i32, i32) {
    %c0_i32 = arith.constant 0 : i32
    %c0_i32_0 = arith.constant 0 : i32
    return %arg0, %c0_i32 : i32, i32
  }
}

</mosaic_0001>

<llo_original>
// kernel: tpu_custom_call.1
$region0: #{tpu_custom_call.1}
  #allocation0 [shape = 'u32[]', space=smem, size = 0x4, offset = 0x4, fixed_abs, tag = 'smem constant byte address 0x4 - core index']
  #allocation1 [shape = 'u32[72,128]{1,0:T(1,128)}', space=vmem, size = 0x9000, scoped, tag = 'internal scratch']
  #allocation2 [shape = 's32[128,128]{1,0:T(8,128)}', space=vmem, size = 0x10000, scoped, tag = 'scratch operand']
  %s0 = inlined_call_operand.hbm [shape: s8[256,256], index: 0, kind: input, shape index: {}]
  %s1 = inlined_call_operand.hbm [shape: f32[256,128], index: 1, kind: input, shape index: {}]
  %s2 = inlined_call_operand.hbm [shape: bf16[256,128], index: 2, kind: output, shape index: {0}]
  %s3 = inlined_call_operand.vmem [shape: f32[256,1], index: 3, kind: output, shape index: {1}]
  %4 = xla_tuple %s2, %s3
  %s5 = sld [smem:[#allocation0]]
  $region65: #{tpu_custom_call.1} parent=0
    _
  %s7 = ssub.s32 1, %s5
  %s8 = scalar_select 0, %s7, %s5
  $region1: #{tpu_custom_call.1} parent=0
    #allocation3 [shape = 'u8[65536]{0}', space=vmem, size = 0x10000, scoped, tag = 'input window, operand 0']
    #allocation4 [shape = 's32[2]{0}', space=sflag, size = 0x8, scoped, tag = 'scoped memory for tpu_custom_call.1']
    #allocation5 [shape = 's32[2]{0}', space=sflag, size = 0x8, scoped, tag = 'scoped memory for tpu_custom_call.1']
    #allocation6 [shape = 'u8[131072]{0}', space=vmem, size = 0x20000, scoped, tag = 'input window, operand 1']
    #allocation7 [shape = 's32[2]{0}', space=sflag, size = 0x8, scoped, tag = 'scoped memory for tpu_custom_call.1']
    #allocation8 [shape = 'u8[65536]{0}', space=vmem, size = 0x10000, scoped, tag = 'output window, operand 0']
    %9 = vsyncpa [#allocation4], 0
    %s10 = scalar_lea.sflag [#allocation4], 1
    %11 = vsyncpa %s10, 0
    %12 = vsyncpa [#allocation7], 0
    %s13 = scalar_lea.sflag [#allocation7], 1
    %14 = vsyncpa %s13, 0
    %15 = vsyncpa [#allocation5], 0
    %s16 = scalar_lea.sflag [#allocation5], 1
    %17 = vsyncpa %s16, 0
    loop: start=0, step=1, limit=4
    $region2: #{tpu_custom_call.1} parent=1 // loop_pre_header
      _
    $region3: #{tpu_custom_call.1} parent=1 // loop_header
      %s19 = sphi 0, %s23
      %p20 = scmp.ge.s32.totalorder %s19, 4
      %s26 = sphi 0, %s38
      %s27 = sphi 0, %s34
      %s28 = sphi 0, %s26
      %s29 = sphi 0, %s27
      %s30 = sphi 0, %s28
      %s31 = sphi 0, %s29
      %s43 = sphi 0, %s45
      %s46 = sphi 0, %s43
      %s47 = sphi 0, %s46
      %s63 = sphi 0, %s47
      %s69 = sphi 0, %s71
      %s72 = sphi 0, %s69
      %s73 = sphi 0, %s72
      %s89 = sphi 0, %s73
      %s95 = sphi 0, %s97
      %s98 = sphi 0, %s95
      %s99 = sphi 0, %s98
      %s115 = sphi 0, %s99
      %s121 = sphi 0, %s123
      %s124 = sphi 0, %s121
      %s125 = sphi 0, %s124
      %s141 = sphi 0, %s125
    $region4: #{tpu_custom_call.1} parent=1 // loop_header_branch
      %22 = sbr.rel (%p20) target = $region8
    $region5: #{tpu_custom_call.1} parent=1 // loop_body
      %s24 = ssub.s32 %s19, 1
      %s25 = ssub.s32 %s19, 2
      %s32 = sadd.s32 1, %s27
      %p33 = scmp.ge.s32.totalorder %s32, 1
      %s34 = scalar_select %p33, 0, %s32
      %s35 = sadd.s32 1, %s26
      %s36 = scalar_select %p33, %s35, %s26
      %p37 = scmp.ge.s32.totalorder %s36, 2
      %s38 = scalar_select %p37, 0, %s36
      %s39 = ssub.s32 %s26, %s38
      %s40 = ssub.s32 %s27, %s34
      %s41 = sor.u32 %s39, %s40
      %p42 = scmp.eq.s32.totalorder %s41, 0
      %s44 = sadd.s32 %s43, 1
      %s45 = scalar_select %p42, %s43, %s44
      %p48 = pneg %p42
      %p49 = scmp.eq.s32.totalorder %s19, 1
      %p50 = por %p48, %p49
      %p51 = scmp.ne.s32.totalorder %s43, %s46
      %p52 = scmp.eq.s32.totalorder %s19, 0
      %p53 = por %p51, %p52
      %p54 = scmp.ne.s32.totalorder %s43, %s46
      %p55 = scmp.eq.s32.totalorder %s24, 1
      %p56 = por %p54, %p55
      %p57 = scmp.ne.s32.totalorder %s46, %s47
      %p58 = scmp.eq.s32.totalorder %s24, 0
      %p59 = por %p57, %p58
      %p60 = scmp.ne.s32.totalorder %s46, %s47
      %p61 = scmp.eq.s32.totalorder %s25, 1
      %p62 = por %p60, %p61
      %p64 = scmp.ne.s32.totalorder %s47, %s63
      %p65 = scmp.eq.s32.totalorder %s25, 0
      %p66 = por %p64, %p65
      %s67 = ssub.s32 %s26, %s38
      %p68 = scmp.eq.s32.totalorder %s67, 0
      %s70 = sadd.s32 %s69, 1
      %s71 = scalar_select %p68, %s69, %s70
      %p74 = pneg %p68
      %p75 = scmp.eq.s32.totalorder %s19, 1
      %p76 = por %p74, %p75
      %p77 = scmp.ne.s32.totalorder %s69, %s72
      %p78 = scmp.eq.s32.totalorder %s19, 0
      %p79 = por %p77, %p78
      %p80 = scmp.ne.s32.totalorder %s69, %s72
      %p81 = scmp.eq.s32.totalorder %s24, 1
      %p82 = por %p80, %p81
      %p83 = scmp.ne.s32.totalorder %s72, %s73
      %p84 = scmp.eq.s32.totalorder %s24, 0
      %p85 = por %p83, %p84
      %p86 = scmp.ne.s32.totalorder %s72, %s73
      %p87 = scmp.eq.s32.totalorder %s25, 1
      %p88 = por %p86, %p87
      %p90 = scmp.ne.s32.totalorder %s73, %s89
      %p91 = scmp.eq.s32.totalorder %s25, 0
      %p92 = por %p90, %p91
      %s93 = ssub.s32 %s26, %s38
      %p94 = scmp.eq.s32.totalorder %s93, 0
      %s96 = sadd.s32 %s95, 1
      %s97 = scalar_select %p94, %s95, %s96
      %p100 = pneg %p94
      %p101 = scmp.eq.s32.totalorder %s19, 1
      %p102 = por %p100, %p101
      %p103 = scmp.ne.s32.totalorder %s95, %s98
      %p104 = scmp.eq.s32.totalorder %s19, 0
      %p105 = por %p103, %p104
      %p106 = scmp.ne.s32.totalorder %s95, %s98
      %p107 = scmp.eq.s32.totalorder %s24, 1
      %p108 = por %p106, %p107
      %p109 = scmp.ne.s32.totalorder %s98, %s99
      %p110 = scmp.eq.s32.totalorder %s24, 0
      %p111 = por %p109, %p110
      %p112 = scmp.ne.s32.totalorder %s98, %s99
      %p113 = scmp.eq.s32.totalorder %s25, 1
      %p114 = por %p112, %p113
      %p116 = scmp.ne.s32.totalorder %s99, %s115
      %p117 = scmp.eq.s32.totalorder %s25, 0
      %p118 = por %p116, %p117
      %s119 = ssub.s32 %s26, %s38
      %p120 = scmp.eq.s32.totalorder %s119, 0
      %s122 = sadd.s32 %s121, 1
      %s123 = scalar_select %p120, %s121, %s122
      %p126 = pneg %p120
      %p127 = scmp.eq.s32.totalorder %s19, 1
      %p128 = por %p126, %p127
      %p129 = scmp.ne.s32.totalorder %s121, %s124
      %p130 = scmp.eq.s32.totalorder %s19, 0
      %p131 = por %p129, %p130
      %p132 = scmp.ne.s32.totalorder %s121, %s124
      %p133 = scmp.eq.s32.totalorder %s24, 1
      %p134 = por %p132, %p133
      %p135 = scmp.ne.s32.totalorder %s124, %s125
      %p136 = scmp.eq.s32.totalorder %s24, 0
      %p137 = por %p135, %p136
      %p138 = scmp.ne.s32.totalorder %s124, %s125
      %p139 = scmp.eq.s32.totalorder %s25, 1
      %p140 = por %p138, %p139
      %p142 = scmp.ne.s32.totalorder %s125, %s141
      %p143 = scmp.eq.s32.totalorder %s25, 0
      %p144 = por %p142, %p143
      %p145 = scmp.le.s32.totalorder 1, %s19
      %p146 = scmp.lt.s32.totalorder %s19, 3
      %p147 = pnand %p145, %p146
      %p148 = pneg %p147
      // Predicated region
      $region9: #{tpu_custom_call.1} parent=5 // pred_check
        _
      $region10: #{tpu_custom_call.1} parent=5 // pred_check_branch
        %150 = sbr.rel (%p147) target = $region12
      $region11: #{tpu_custom_call.1} parent=5 // pred_region
        %s151 = ssub.s32 %s19, 1
      $region12: #{tpu_custom_call.1} parent=5 // pred_fallthru
        _
      %p152 = scmp.lt.s32.totalorder %s19, 2
      // Predicated region
      $region13: #{tpu_custom_call.1} parent=5 // pred_check
        %p153 = pneg %p152
      $region14: #{tpu_custom_call.1} parent=5 // pred_check_branch
        %155 = sbr.rel (%p153) target = $region16
      $region15: #{tpu_custom_call.1} parent=5 // pred_region
        // Predicated region
        $region17: #{tpu_custom_call.1} parent=15 // pred_check
          %p156 = pneg %p53
        $region18: #{tpu_custom_call.1} parent=15 // pred_check_branch
          %158 = sbr.rel (%p156) target = $region20
        $region19: #{tpu_custom_call.1} parent=15 // pred_region
          %s159 = sand.u32 %s43, 1
          %s160 = scalar_lea.sflag [#allocation4], %s159
          %s161 = sand.u32 %s43, 1
          %s162 = smul.addr %s161, 64
          %s163 = scalar_lea.vmem [#allocation3], %s162
          %s164 = smul.u32 4, %s26
          %s165 = smul.u32 2, %s27
          %167 = vsyncadd %s160, 0
          %s168 = smul.addr %s164, 2
          %s169 = sadd.s32 %s165, %s168
          %s170 = smul.addr %s169, 8
          %s171 = scalar_lea.hbm %s0, %s170
          %s172 = sshll.u32 %s171, 4
          %s173 = int_to_ptr.hbm [resolvable:$true] %s172
          %s174 = sshll.u32 %s163, 4
          %s175 = int_to_ptr.vmem [resolvable:$true] %s174
          %180 = dma.hbm_to_vmem [thread:$0]  %s173, 1024, %s175, %s160, 256, 256, 16
        $region20: #{tpu_custom_call.1} parent=15 // pred_fallthru
          _
        // Predicated region
        $region21: #{tpu_custom_call.1} parent=15 // pred_check
          %p181 = pneg %p79
        $region22: #{tpu_custom_call.1} parent=15 // pred_check_branch
          %183 = sbr.rel (%p181) target = $region24
        $region23: #{tpu_custom_call.1} parent=15 // pred_region
          %s184 = sand.u32 %s69, 1
          %s185 = scalar_lea.sflag [#allocation7], %s184
          %s186 = sand.u32 %s69, 1
          %s187 = smul.addr %s186, 128
          %s188 = scalar_lea.vmem [#allocation6], %s187
          %s189 = smul.u32 16, %s26
          %191 = vsyncadd %s185, 0
          %s192 = smul.addr %s189, 8
          %s193 = scalar_lea.hbm %s1, %s192
          %s194 = sshll.u32 %s193, 4
          %s195 = int_to_ptr.hbm [resolvable:$true] %s194
          %s196 = sshll.u32 %s188, 4
          %s197 = int_to_ptr.vmem [resolvable:$true] %s196
          %202 = dma.hbm_to_vmem [thread:$0]  %s195, 2048, %s197, %s185, 128, 128, 8
        $region24: #{tpu_custom_call.1} parent=15 // pred_fallthru
          _
      $region16: #{tpu_custom_call.1} parent=5 // pred_fallthru
        _
      %p203 = scmp.le.s32.totalorder 1, %s19
      %p204 = scmp.lt.s32.totalorder %s19, 3
      %p205 = pnand %p203, %p204
      %p206 = pneg %p205
      // Predicated region
      $region25: #{tpu_custom_call.1} parent=5 // pred_check
        _
      $region26: #{tpu_custom_call.1} parent=5 // pred_check_branch
        %208 = sbr.rel (%p205) target = $region28
      $region27: #{tpu_custom_call.1} parent=5 // pred_region
        %s209 = ssub.s32 %s19, 1
        %s210 = sand.u32 %s46, 1
        %s211 = scalar_lea.sflag [#allocation4], %s210
        %s212 = sand.u32 %s46, 1
        %s213 = smul.addr %s212, 64
        %s214 = scalar_lea.vmem [#allocation3], %s213
        // Predicated region
        $region29: #{tpu_custom_call.1} parent=27 // pred_check
          %p215 = pneg %p59
        $region30: #{tpu_custom_call.1} parent=27 // pred_check_branch
          %217 = sbr.rel (%p215) target = $region32
        $region31: #{tpu_custom_call.1} parent=27 // pred_region
          %219 = dma.done %s211, 1024
        $region32: #{tpu_custom_call.1} parent=27 // pred_fallthru
          _
        %s220 = sand.u32 %s72, 1
        %s221 = scalar_lea.sflag [#allocation7], %s220
        %s222 = sand.u32 %s72, 1
        %s223 = smul.addr %s222, 128
        %s224 = scalar_lea.vmem [#allocation6], %s223
        // Predicated region
        $region33: #{tpu_custom_call.1} parent=27 // pred_check
          %p225 = pneg %p85
        $region34: #{tpu_custom_call.1} parent=27 // pred_check_branch
          %227 = sbr.rel (%p225) target = $region36
        $region35: #{tpu_custom_call.1} parent=27 // pred_region
          %229 = dma.done %s221, 2048
        $region36: #{tpu_custom_call.1} parent=27 // pred_fallthru
          _
        %s230 = sand.u32 %s46, 1
        %s231 = scalar_lea.sflag [#allocation4], %s230
        %s232 = sand.u32 %s46, 1
        %s233 = smul.addr %s232, 64
        %s234 = scalar_lea.vmem [#allocation3], %s233
        %p235 = pneg %p59
        %p236 = pneg %p56
        %s237 = sand.u32 %s72, 1
        %s238 = scalar_lea.sflag [#allocation7], %s237
        %s239 = sand.u32 %s72, 1
        %s240 = smul.addr %s239, 128
        %s241 = scalar_lea.vmem [#allocation6], %s240
        %p242 = pneg %p85
        %p243 = pneg %p82
        %p244 = pneg %p111
        %p245 = pneg %p108
        %s246 = sand.u32 %s98, 1
        %s247 = scalar_lea.sflag [#allocation5], %s246
        %s248 = sand.u32 %s98, 1
        %s249 = smul.addr %s248, 64
        %s250 = scalar_lea.vmem [#allocation8], %s249
        %p251 = pneg %p137
        %p252 = pneg %p134
        %s253 = smul.u32 16, %s28
        %p254 = scmp.lt.s32.totalorder %s253, 31
        %s255 = scalar_select %p254, %s253, 31
        %s256 = smul.addr %s255, 8
        %s257 = scalar_lea.vmem %s3, %s256
        %s258 = smul.u32 4, %s28
        %s259 = smul.u32 2, %s29
        %s260 = smul.u32 16, %s28
        %s261 = smul.u32 16, %s28
        %s262 = smul.u32 16, %s28
        %p263 = scmp.lt.s32.totalorder %s262, 31
        %s264 = scalar_select %p263, %s262, 31
        %s265 = smul.addr %s264, 8
        %s266 = scalar_lea.vmem %s3, %s265
        %s267 = smul.u32 16, %s28
        %p268 = scmp.eq.s32.totalorder %s29, 0
        // Predicated region
        $region37: #{tpu_custom_call.1} parent=27 // pred_check
          %p269 = pneg %p268
        $region38: #{tpu_custom_call.1} parent=27 // pred_check_branch
          %271 = sbr.rel (%p269) target = $region40
        $region39: #{tpu_custom_call.1} parent=27 // pred_region
          %272 = vst [vmem:[#allocation2] sm:$0xff] 0
          %273 = vst [vmem:[#allocation2 + $0x8] sm:$0xff] 0
          %274 = vst [vmem:[#allocation2 + $0x10] sm:$0xff] 0
          %275 = vst [vmem:[#allocation2 + $0x18] sm:$0xff] 0
          %276 = vst [vmem:[#allocation2 + $0x20] sm:$0xff] 0
          %277 = vst [vmem:[#allocation2 + $0x28] sm:$0xff] 0
          %278 = vst [vmem:[#allocation2 + $0x30] sm:$0xff] 0
          %279 = vst [vmem:[#allocation2 + $0x38] sm:$0xff] 0
          %280 = vst [vmem:[#allocation2 + $0x40] sm:$0xff] 0
          %281 = vst [vmem:[#allocation2 + $0x48] sm:$0xff] 0
          %282 = vst [vmem:[#allocation2 + $0x50] sm:$0xff] 0
          %283 = vst [vmem:[#allocation2 + $0x58] sm:$0xff] 0
          %284 = vst [vmem:[#allocation2 + $0x60] sm:$0xff] 0
          %285 = vst [vmem:[#allocation2 + $0x68] sm:$0xff] 0
          %286 = vst [vmem:[#allocation2 + $0x70] sm:$0xff] 0
          %287 = vst [vmem:[#allocation2 + $0x78] sm:$0xff] 0
        $region40: #{tpu_custom_call.1} parent=27 // pred_fallthru
          _
        %v288 = vld [vmem:[#allocation2] sm:$0xff]
        %v289 = vld [vmem:[#allocation2 + $0x8] sm:$0xff]
        %v290 = vld [vmem:[#allocation2 + $0x10] sm:$0xff]
        %v291 = vld [vmem:[#allocation2 + $0x18] sm:$0xff]
        %v292 = vld [vmem:[#allocation2 + $0x20] sm:$0xff]
        %v293 = vld [vmem:[#allocation2 + $0x28] sm:$0xff]
        %v294 = vld [vmem:[#allocation2 + $0x30] sm:$0xff]
        %v295 = vld [vmem:[#allocation2 + $0x38] sm:$0xff]
        %v296 = vld [vmem:[#allocation2 + $0x40] sm:$0xff]
        %v297 = vld [vmem:[#allocation2 + $0x48] sm:$0xff]
        %v298 = vld [vmem:[#allocation2 + $0x50] sm:$0xff]
        %v299 = vld [vmem:[#allocation2 + $0x58] sm:$0xff]
        %v300 = vld [vmem:[#allocation2 + $0x60] sm:$0xff]
        %v301 = vld [vmem:[#allocation2 + $0x68] sm:$0xff]
        %v302 = vld [vmem:[#allocation2 + $0x70] sm:$0xff]
        %v303 = vld [vmem:[#allocation2 + $0x78] sm:$0xff]
        %v304 = vld [vmem:[%s214] sm:$0xff]
        %v305 = vld [vmem:[%s214 + $0x10] sm:$0xff]
        %v306 = vld [vmem:[%s214 + $0x20] sm:$0xff]
        %v307 = vld [vmem:[%s214 + $0x30] sm:$0xff]
        %v308 = vunpack.c.0.s8 %v304
        %v309 = vunpack.c.1.s8 %v304
        %v310 = vunpack.c.2.s8 %v304
        %v311 = vunpack.c.3.s8 %v304
        %v312 = vunpack.c.0.s8 %v305
        %v313 = vunpack.c.1.s8 %v305
        %v314 = vunpack.c.2.s8 %v305
        %v315 = vunpack.c.3.s8 %v305
        %v316 = vunpack.c.0.s8 %v306
        %v317 = vunpack.c.1.s8 %v306
        %v318 = vunpack.c.2.s8 %v306
        %v319 = vunpack.c.3.s8 %v306
        %v320 = vunpack.c.0.s8 %v307
        %v321 = vunpack.c.1.s8 %v307
        %v322 = vunpack.c.2.s8 %v307
        %v323 = vunpack.c.3.s8 %v307
        %v324 = vadd.s32 %v288, %v308
        %v325 = vadd.s32 %v289, %v309
        %v326 = vadd.s32 %v290, %v310
        %v327 = vadd.s32 %v291, %v311
        %v328 = vadd.s32 %v292, %v312
        %v329 = vadd.s32 %v293, %v313
        %v330 = vadd.s32 %v294, %v314
        %v331 = vadd.s32 %v295, %v315
        %v332 = vadd.s32 %v296, %v316
        %v333 = vadd.s32 %v297, %v317
        %v334 = vadd.s32 %v298, %v318
        %v335 = vadd.s32 %v299, %v319
        %v336 = vadd.s32 %v300, %v320
        %v337 = vadd.s32 %v301, %v321
        %v338 = vadd.s32 %v302, %v322
        %v339 = vadd.s32 %v303, %v323
        %v340 = vld [vmem:[%s214 + $0x8] sm:$0xff]
        %v341 = vld [vmem:[%s214 + $0x18] sm:$0xff]
        %v342 = vld [vmem:[%s214 + $0x28] sm:$0xff]
        %v343 = vld [vmem:[%s214 + $0x38] sm:$0xff]
        %v344 = vunpack.c.0.s8 %v340
        %v345 = vunpack.c.1.s8 %v340
        %v346 = vunpack.c.2.s8 %v340
        %v347 = vunpack.c.3.s8 %v340
        %v348 = vunpack.c.0.s8 %v341
        %v349 = vunpack.c.1.s8 %v341
        %v350 = vunpack.c.2.s8 %v341
        %v351 = vunpack.c.3.s8 %v341
        %v352 = vunpack.c.0.s8 %v342
        %v353 = vunpack.c.1.s8 %v342
        %v354 = vunpack.c.2.s8 %v342
        %v355 = vunpack.c.3.s8 %v342
        %v356 = vunpack.c.0.s8 %v343
        %v357 = vunpack.c.1.s8 %v343
        %v358 = vunpack.c.2.s8 %v343
        %v359 = vunpack.c.3.s8 %v343
        %v360 = vadd.s32 %v324, %v344
        %v361 = vadd.s32 %v325, %v345
        %v362 = vadd.s32 %v326, %v346
        %v363 = vadd.s32 %v327, %v347
        %v364 = vadd.s32 %v328, %v348
        %v365 = vadd.s32 %v329, %v349
        %v366 = vadd.s32 %v330, %v350
        %v367 = vadd.s32 %v331, %v351
        %v368 = vadd.s32 %v332, %v352
        %v369 = vadd.s32 %v333, %v353
        %v370 = vadd.s32 %v334, %v354
        %v371 = vadd.s32 %v335, %v355
        %v372 = vadd.s32 %v336, %v356
        %v373 = vadd.s32 %v337, %v357
        %v374 = vadd.s32 %v338, %v358
        %v375 = vadd.s32 %v339, %v359
        %376 = vst [vmem:[#allocation2] sm:$0xff] %v360
        %377 = vst [vmem:[#allocation2 + $0x8] sm:$0xff] %v361
        %378 = vst [vmem:[#allocation2 + $0x10] sm:$0xff] %v362
        %379 = vst [vmem:[#allocation2 + $0x18] sm:$0xff] %v363
        %380 = vst [vmem:[#allocation2 + $0x20] sm:$0xff] %v364
        %381 = vst [vmem:[#allocation2 + $0x28] sm:$0xff] %v365
        %382 = vst [vmem:[#allocation2 + $0x30] sm:$0xff] %v366
        %383 = vst [vmem:[#allocation2 + $0x38] sm:$0xff] %v367
        %384 = vst [vmem:[#allocation2 + $0x40] sm:$0xff] %v368
        %385 = vst [vmem:[#allocation2 + $0x48] sm:$0xff] %v369
        %386 = vst [vmem:[#allocation2 + $0x50] sm:$0xff] %v370
        %387 = vst [vmem:[#allocation2 + $0x58] sm:$0xff] %v371
        %388 = vst [vmem:[#allocation2 + $0x60] sm:$0xff] %v372
        %389 = vst [vmem:[#allocation2 + $0x68] sm:$0xff] %v373
        %390 = vst [vmem:[#allocation2 + $0x70] sm:$0xff] %v374
        %391 = vst [vmem:[#allocation2 + $0x78] sm:$0xff] %v375
        // Predicated region
        $region41: #{tpu_custom_call.1} parent=27 // pred_check
          %p392 = pneg %p268
        $region42: #{tpu_custom_call.1} parent=27 // pred_check_branch
          %394 = sbr.rel (%p392) target = $region44
        $region43: #{tpu_custom_call.1} parent=27 // pred_region
          %v395 = vld [vmem:[#allocation2] sm:$0xff]
          %v396 = vld [vmem:[#allocation2 + $0x8] sm:$0xff]
          %v397 = vld [vmem:[#allocation2 + $0x10] sm:$0xff]
          %v398 = vld [vmem:[#allocation2 + $0x18] sm:$0xff]
          %v399 = vld [vmem:[#allocation2 + $0x20] sm:$0xff]
          %v400 = vld [vmem:[#allocation2 + $0x28] sm:$0xff]
          %v401 = vld [vmem:[#allocation2 + $0x30] sm:$0xff]
          %v402 = vld [vmem:[#allocation2 + $0x38] sm:$0xff]
          %v403 = vld [vmem:[#allocation2 + $0x40] sm:$0xff]
          %v404 = vld [vmem:[#allocation2 + $0x48] sm:$0xff]
          %v405 = vld [vmem:[#allocation2 + $0x50] sm:$0xff]
          %v406 = vld [vmem:[#allocation2 + $0x58] sm:$0xff]
          %v407 = vld [vmem:[#allocation2 + $0x60] sm:$0xff]
          %v408 = vld [vmem:[#allocation2 + $0x68] sm:$0xff]
          %v409 = vld [vmem:[#allocation2 + $0x70] sm:$0xff]
          %v410 = vld [vmem:[#allocation2 + $0x78] sm:$0xff]
          %v411 = vand.u32 %v395, 65535
          %v412 = vshrl.u32 %v395, 16
          %v413 = vcvt.s32.f32 %v411
          %v414 = vcvt.s32.f32 %v412
          %415 = vadd.xlane.f32.xlu0 %v413
          %v416 = vpop.xlane.xlu0 %415
          %417 = vadd.xlane.f32.xlu0 %v414
          %v418 = vpop.xlane.xlu0 %417
          %v419 = vcvt.f32.s32 %v416
          %v420 = vcvt.f32.s32 %v418
          %v421 = vshll.u32 %v420, 16
          %v422 = vadd.s32 %v421, %v419
          %v423 = vand.u32 %v396, 65535
          %v424 = vshrl.u32 %v396, 16
          %v425 = vcvt.s32.f32 %v423
          %v426 = vcvt.s32.f32 %v424
          %427 = vadd.xlane.f32.xlu0 %v425
          %v428 = vpop.xlane.xlu0 %427
          %429 = vadd.xlane.f32.xlu0 %v426
          %v430 = vpop.xlane.xlu0 %429
          %v431 = vcvt.f32.s32 %v428
          %v432 = vcvt.f32.s32 %v430
          %v433 = vshll.u32 %v432, 16
          %v434 = vadd.s32 %v433, %v431
          %v435 = vand.u32 %v397, 65535
          %v436 = vshrl.u32 %v397, 16
          %v437 = vcvt.s32.f32 %v435
          %v438 = vcvt.s32.f32 %v436
          %439 = vadd.xlane.f32.xlu0 %v437
          %v440 = vpop.xlane.xlu0 %439
          %441 = vadd.xlane.f32.xlu0 %v438
          %v442 = vpop.xlane.xlu0 %441
          %v443 = vcvt.f32.s32 %v440
          %v444 = vcvt.f32.s32 %v442
          %v445 = vshll.u32 %v444, 16
          %v446 = vadd.s32 %v445, %v443
          %v447 = vand.u32 %v398, 65535
          %v448 = vshrl.u32 %v398, 16
          %v449 = vcvt.s32.f32 %v447
          %v450 = vcvt.s32.f32 %v448
          %451 = vadd.xlane.f32.xlu0 %v449
          %v452 = vpop.xlane.xlu0 %451
          %453 = vadd.xlane.f32.xlu0 %v450
          %v454 = vpop.xlane.xlu0 %453
          %v455 = vcvt.f32.s32 %v452
          %v456 = vcvt.f32.s32 %v454
          %v457 = vshll.u32 %v456, 16
          %v458 = vadd.s32 %v457, %v455
          %v459 = vand.u32 %v399, 65535
          %v460 = vshrl.u32 %v399, 16
          %v461 = vcvt.s32.f32 %v459
          %v462 = vcvt.s32.f32 %v460
          %463 = vadd.xlane.f32.xlu0 %v461
          %v464 = vpop.xlane.xlu0 %463
          %465 = vadd.xlane.f32.xlu0 %v462
          %v466 = vpop.xlane.xlu0 %465
          %v467 = vcvt.f32.s32 %v464
          %v468 = vcvt.f32.s32 %v466
          %v469 = vshll.u32 %v468, 16
          %v470 = vadd.s32 %v469, %v467
          %v471 = vand.u32 %v400, 65535
          %v472 = vshrl.u32 %v400, 16
          %v473 = vcvt.s32.f32 %v471
          %v474 = vcvt.s32.f32 %v472
          %475 = vadd.xlane.f32.xlu0 %v473
          %v476 = vpop.xlane.xlu0 %475
          %477 = vadd.xlane.f32.xlu0 %v474
          %v478 = vpop.xlane.xlu0 %477
          %v479 = vcvt.f32.s32 %v476
          %v480 = vcvt.f32.s32 %v478
          %v481 = vshll.u32 %v480, 16
          %v482 = vadd.s32 %v481, %v479
          %v483 = vand.u32 %v401, 65535
          %v484 = vshrl.u32 %v401, 16
          %v485 = vcvt.s32.f32 %v483
          %v486 = vcvt.s32.f32 %v484
          %487 = vadd.xlane.f32.xlu0 %v485
          %v488 = vpop.xlane.xlu0 %487
          %489 = vadd.xlane.f32.xlu0 %v486
          %v490 = vpop.xlane.xlu0 %489
          %v491 = vcvt.f32.s32 %v488
          %v492 = vcvt.f32.s32 %v490
          %v493 = vshll.u32 %v492, 16
          %v494 = vadd.s32 %v493, %v491
          %v495 = vand.u32 %v402, 65535
          %v496 = vshrl.u32 %v402, 16
          %v497 = vcvt.s32.f32 %v495
          %v498 = vcvt.s32.f32 %v496
          %499 = vadd.xlane.f32.xlu0 %v497
          %v500 = vpop.xlane.xlu0 %499
          %501 = vadd.xlane.f32.xlu0 %v498
          %v502 = vpop.xlane.xlu0 %501
          %v503 = vcvt.f32.s32 %v500
          %v504 = vcvt.f32.s32 %v502
          %v505 = vshll.u32 %v504, 16
          %v506 = vadd.s32 %v505, %v503
          %v507 = vand.u32 %v403, 65535
          %v508 = vshrl.u32 %v403, 16
          %v509 = vcvt.s32.f32 %v507
          %v510 = vcvt.s32.f32 %v508
          %511 = vadd.xlane.f32.xlu0 %v509
          %v512 = vpop.xlane.xlu0 %511
          %513 = vadd.xlane.f32.xlu0 %v510
          %v514 = vpop.xlane.xlu0 %513
          %v515 = vcvt.f32.s32 %v512
          %v516 = vcvt.f32.s32 %v514
          %v517 = vshll.u32 %v516, 16
          %v518 = vadd.s32 %v517, %v515
          %v519 = vand.u32 %v404, 65535
          %v520 = vshrl.u32 %v404, 16
          %v521 = vcvt.s32.f32 %v519
          %v522 = vcvt.s32.f32 %v520
          %523 = vadd.xlane.f32.xlu0 %v521
          %v524 = vpop.xlane.xlu0 %523
          %525 = vadd.xlane.f32.xlu0 %v522
          %v526 = vpop.xlane.xlu0 %525
          %v527 = vcvt.f32.s32 %v524
          %v528 = vcvt.f32.s32 %v526
          %v529 = vshll.u32 %v528, 16
          %v530 = vadd.s32 %v529, %v527
          %v531 = vand.u32 %v405, 65535
          %v532 = vshrl.u32 %v405, 16
          %v533 = vcvt.s32.f32 %v531
          %v534 = vcvt.s32.f32 %v532
          %535 = vadd.xlane.f32.xlu0 %v533
          %v536 = vpop.xlane.xlu0 %535
          %537 = vadd.xlane.f32.xlu0 %v534
          %v538 = vpop.xlane.xlu0 %537
          %v539 = vcvt.f32.s32 %v536
          %v540 = vcvt.f32.s32 %v538
          %v541 = vshll.u32 %v540, 16
          %v542 = vadd.s32 %v541, %v539
          %v543 = vand.u32 %v406, 65535
          %v544 = vshrl.u32 %v406, 16
          %v545 = vcvt.s32.f32 %v543
          %v546 = vcvt.s32.f32 %v544
          %547 = vadd.xlane.f32.xlu0 %v545
          %v548 = vpop.xlane.xlu0 %547
          %549 = vadd.xlane.f32.xlu0 %v546
          %v550 = vpop.xlane.xlu0 %549
          %v551 = vcvt.f32.s32 %v548
          %v552 = vcvt.f32.s32 %v550
          %v553 = vshll.u32 %v552, 16
          %v554 = vadd.s32 %v553, %v551
          %v555 = vand.u32 %v407, 65535
          %v556 = vshrl.u32 %v407, 16
          %v557 = vcvt.s32.f32 %v555
          %v558 = vcvt.s32.f32 %v556
          %559 = vadd.xlane.f32.xlu0 %v557
          %v560 = vpop.xlane.xlu0 %559
          %561 = vadd.xlane.f32.xlu0 %v558
          %v562 = vpop.xlane.xlu0 %561
          %v563 = vcvt.f32.s32 %v560
          %v564 = vcvt.f32.s32 %v562
          %v565 = vshll.u32 %v564, 16
          %v566 = vadd.s32 %v565, %v563
          %v567 = vand.u32 %v408, 65535
          %v568 = vshrl.u32 %v408, 16
          %v569 = vcvt.s32.f32 %v567
          %v570 = vcvt.s32.f32 %v568
          %571 = vadd.xlane.f32.xlu0 %v569
          %v572 = vpop.xlane.xlu0 %571
          %573 = vadd.xlane.f32.xlu0 %v570
          %v574 = vpop.xlane.xlu0 %573
          %v575 = vcvt.f32.s32 %v572
          %v576 = vcvt.f32.s32 %v574
          %v577 = vshll.u32 %v576, 16
          %v578 = vadd.s32 %v577, %v575
          %v579 = vand.u32 %v409, 65535
          %v580 = vshrl.u32 %v409, 16
          %v581 = vcvt.s32.f32 %v579
          %v582 = vcvt.s32.f32 %v580
          %583 = vadd.xlane.f32.xlu0 %v581
          %v584 = vpop.xlane.xlu0 %583
          %585 = vadd.xlane.f32.xlu0 %v582
          %v586 = vpop.xlane.xlu0 %585
          %v587 = vcvt.f32.s32 %v584
          %v588 = vcvt.f32.s32 %v586
          %v589 = vshll.u32 %v588, 16
          %v590 = vadd.s32 %v589, %v587
          %v591 = vand.u32 %v410, 65535
          %v592 = vshrl.u32 %v410, 16
          %v593 = vcvt.s32.f32 %v591
          %v594 = vcvt.s32.f32 %v592
          %595 = vadd.xlane.f32.xlu0 %v593
          %v596 = vpop.xlane.xlu0 %595
          %597 = vadd.xlane.f32.xlu0 %v594
          %v598 = vpop.xlane.xlu0 %597
          %v599 = vcvt.f32.s32 %v596
          %v600 = vcvt.f32.s32 %v598
          %v601 = vshll.u32 %v600, 16
          %v602 = vadd.s32 %v601, %v599
          %v603 = vcvt.s32.f32 %v422
          %v604 = vcvt.s32.f32 %v434
          %v605 = vcvt.s32.f32 %v446
          %v606 = vcvt.s32.f32 %v458
          %v607 = vcvt.s32.f32 %v470
          %v608 = vcvt.s32.f32 %v482
          %v609 = vcvt.s32.f32 %v494
          %v610 = vcvt.s32.f32 %v506
          %v611 = vcvt.s32.f32 %v518
          %v612 = vcvt.s32.f32 %v530
          %v613 = vcvt.s32.f32 %v542
          %v614 = vcvt.s32.f32 %v554
          %v615 = vcvt.s32.f32 %v566
          %v616 = vcvt.s32.f32 %v578
          %v617 = vcvt.s32.f32 %v590
          %v618 = vcvt.s32.f32 %v602
          %v619 = vadd.f32 %v603, 1.0
          %v620 = vadd.f32 %v604, 1.0
          %v621 = vadd.f32 %v605, 1.0
          %v622 = vadd.f32 %v606, 1.0
          %v623 = vadd.f32 %v607, 1.0
          %v624 = vadd.f32 %v608, 1.0
          %v625 = vadd.f32 %v609, 1.0
          %v626 = vadd.f32 %v610, 1.0
          %v627 = vadd.f32 %v611, 1.0
          %v628 = vadd.f32 %v612, 1.0
          %v629 = vadd.f32 %v613, 1.0
          %v630 = vadd.f32 %v614, 1.0
          %v631 = vadd.f32 %v615, 1.0
          %v632 = vadd.f32 %v616, 1.0
          %v633 = vadd.f32 %v617, 1.0
          %v634 = vadd.f32 %v618, 1.0
          %v635 = vrsqrt.pop %v619
          %v636 = vmul.f32 %v635, %v619
          %v637 = vmul.f32 %v636, %v635
          %v638 = vmul.f32 0.5, %v637
          %v639 = vsub.f32 1.5, %v638
          %v640 = vmul.f32 %v635, %v639
          %vm641 = vweird.f32 %v619
          %vm642 = vweird.f32 %v635
          %vm643 = vmor %vm641, %vm642
          %v644 = vsel %vm643, %v635, %v640
          %v645 = vrsqrt.pop %v620
          %v646 = vmul.f32 %v645, %v620
          %v647 = vmul.f32 %v646, %v645
          %v648 = vmul.f32 0.5, %v647
          %v649 = vsub.f32 1.5, %v648
          %v650 = vmul.f32 %v645, %v649
          %vm651 = vweird.f32 %v620
          %vm652 = vweird.f32 %v645
          %vm653 = vmor %vm651, %vm652
          %v654 = vsel %vm653, %v645, %v650
          %v655 = vrsqrt.pop %v621
          %v656 = vmul.f32 %v655, %v621
          %v657 = vmul.f32 %v656, %v655
          %v658 = vmul.f32 0.5, %v657
          %v659 = vsub.f32 1.5, %v658
          %v660 = vmul.f32 %v655, %v659
          %vm661 = vweird.f32 %v621
          %vm662 = vweird.f32 %v655
          %vm663 = vmor %vm661, %vm662
          %v664 = vsel %vm663, %v655, %v660
          %v665 = vrsqrt.pop %v622
          %v666 = vmul.f32 %v665, %v622
          %v667 = vmul.f32 %v666, %v665
          %v668 = vmul.f32 0.5, %v667
          %v669 = vsub.f32 1.5, %v668
          %v670 = vmul.f32 %v665, %v669
          %vm671 = vweird.f32 %v622
          %vm672 = vweird.f32 %v665
          %vm673 = vmor %vm671, %vm672
          %v674 = vsel %vm673, %v665, %v670
          %v675 = vrsqrt.pop %v623
          %v676 = vmul.f32 %v675, %v623
          %v677 = vmul.f32 %v676, %v675
          %v678 = vmul.f32 0.5, %v677
          %v679 = vsub.f32 1.5, %v678
          %v680 = vmul.f32 %v675, %v679
          %vm681 = vweird.f32 %v623
          %vm682 = vweird.f32 %v675
          %vm683 = vmor %vm681, %vm682
          %v684 = vsel %vm683, %v675, %v680
          %v685 = vrsqrt.pop %v624
          %v686 = vmul.f32 %v685, %v624
          %v687 = vmul.f32 %v686, %v685
          %v688 = vmul.f32 0.5, %v687
          %v689 = vsub.f32 1.5, %v688
          %v690 = vmul.f32 %v685, %v689
          %vm691 = vweird.f32 %v624
          %vm692 = vweird.f32 %v685
          %vm693 = vmor %vm691, %vm692
          %v694 = vsel %vm693, %v685, %v690
          %v695 = vrsqrt.pop %v625
          %v696 = vmul.f32 %v695, %v625
          %v697 = vmul.f32 %v696, %v695
          %v698 = vmul.f32 0.5, %v697
          %v699 = vsub.f32 1.5, %v698
          %v700 = vmul.f32 %v695, %v699
          %vm701 = vweird.f32 %v625
          %vm702 = vweird.f32 %v695
          %vm703 = vmor %vm701, %vm702
          %v704 = vsel %vm703, %v695, %v700
          %v705 = vrsqrt.pop %v626
          %v706 = vmul.f32 %v705, %v626
          %v707 = vmul.f32 %v706, %v705
          %v708 = vmul.f32 0.5, %v707
          %v709 = vsub.f32 1.5, %v708
          %v710 = vmul.f32 %v705, %v709
          %vm711 = vweird.f32 %v626
          %vm712 = vweird.f32 %v705
          %vm713 = vmor %vm711, %vm712
          %v714 = vsel %vm713, %v705, %v710
          %v715 = vrsqrt.pop %v627
          %v716 = vmul.f32 %v715, %v627
          %v717 = vmul.f32 %v716, %v715
          %v718 = vmul.f32 0.5, %v717
          %v719 = vsub.f32 1.5, %v718
          %v720 = vmul.f32 %v715, %v719
          %vm721 = vweird.f32 %v627
          %vm722 = vweird.f32 %v715
          %vm723 = vmor %vm721, %vm722
          %v724 = vsel %vm723, %v715, %v720
          %v725 = vrsqrt.pop %v628
          %v726 = vmul.f32 %v725, %v628
          %v727 = vmul.f32 %v726, %v725
          %v728 = vmul.f32 0.5, %v727
          %v729 = vsub.f32 1.5, %v728
          %v730 = vmul.f32 %v725, %v729
          %vm731 = vweird.f32 %v628
          %vm732 = vweird.f32 %v725
          %vm733 = vmor %vm731, %vm732
          %v734 = vsel %vm733, %v725, %v730
          %v735 = vrsqrt.pop %v629
          %v736 = vmul.f32 %v735, %v629
          %v737 = vmul.f32 %v736, %v735
          %v738 = vmul.f32 0.5, %v737
          %v739 = vsub.f32 1.5, %v738
          %v740 = vmul.f32 %v735, %v739
          %vm741 = vweird.f32 %v629
          %vm742 = vweird.f32 %v735
          %vm743 = vmor %vm741, %vm742
          %v744 = vsel %vm743, %v735, %v740
          %v745 = vrsqrt.pop %v630
          %v746 = vmul.f32 %v745, %v630
          %v747 = vmul.f32 %v746, %v745
          %v748 = vmul.f32 0.5, %v747
          %v749 = vsub.f32 1.5, %v748
          %v750 = vmul.f32 %v745, %v749
          %vm751 = vweird.f32 %v630
          %vm752 = vweird.f32 %v745
          %vm753 = vmor %vm751, %vm752
          %v754 = vsel %vm753, %v745, %v750
          %v755 = vrsqrt.pop %v631
          %v756 = vmul.f32 %v755, %v631
          %v757 = vmul.f32 %v756, %v755
          %v758 = vmul.f32 0.5, %v757
          %v759 = vsub.f32 1.5, %v758
          %v760 = vmul.f32 %v755, %v759
          %vm761 = vweird.f32 %v631
          %vm762 = vweird.f32 %v755
          %vm763 = vmor %vm761, %vm762
          %v764 = vsel %vm763, %v755, %v760
          %v765 = vrsqrt.pop %v632
          %v766 = vmul.f32 %v765, %v632
          %v767 = vmul.f32 %v766, %v765
          %v768 = vmul.f32 0.5, %v767
          %v769 = vsub.f32 1.5, %v768
          %v770 = vmul.f32 %v765, %v769
          %vm771 = vweird.f32 %v632
          %vm772 = vweird.f32 %v765
          %vm773 = vmor %vm771, %vm772
          %v774 = vsel %vm773, %v765, %v770
          %v775 = vrsqrt.pop %v633
          %v776 = vmul.f32 %v775, %v633
          %v777 = vmul.f32 %v776, %v775
          %v778 = vmul.f32 0.5, %v777
          %v779 = vsub.f32 1.5, %v778
          %v780 = vmul.f32 %v775, %v779
          %vm781 = vweird.f32 %v633
          %vm782 = vweird.f32 %v775
          %vm783 = vmor %vm781, %vm782
          %v784 = vsel %vm783, %v775, %v780
          %v785 = vrsqrt.pop %v634
          %v786 = vmul.f32 %v785, %v634
          %v787 = vmul.f32 %v786, %v785
          %v788 = vmul.f32 0.5, %v787
          %v789 = vsub.f32 1.5, %v788
          %v790 = vmul.f32 %v785, %v789
          %vm791 = vweird.f32 %v634
          %vm792 = vweird.f32 %v785
          %vm793 = vmor %vm791, %vm792
          %v794 = vsel %vm793, %v785, %v790
          %vm795 = vcmask 7168
          %796 = vst.msk [vmem:[%s266] sm:$0xff] %vm795, %v644
          %797 = vst.msk [vmem:[%s266 + $0x8] sm:$0xff] %vm795, %v654
          %798 = vst.msk [vmem:[%s266 + $0x10] sm:$0xff] %vm795, %v664
          %799 = vst.msk [vmem:[%s266 + $0x18] sm:$0xff] %vm795, %v674
          %800 = vst.msk [vmem:[%s266 + $0x20] sm:$0xff] %vm795, %v684
          %801 = vst.msk [vmem:[%s266 + $0x28] sm:$0xff] %vm795, %v694
          %802 = vst.msk [vmem:[%s266 + $0x30] sm:$0xff] %vm795, %v704
          %803 = vst.msk [vmem:[%s266 + $0x38] sm:$0xff] %vm795, %v714
          %804 = vst.msk [vmem:[%s266 + $0x40] sm:$0xff] %vm795, %v724
          %805 = vst.msk [vmem:[%s266 + $0x48] sm:$0xff] %vm795, %v734
          %806 = vst.msk [vmem:[%s266 + $0x50] sm:$0xff] %vm795, %v744
          %807 = vst.msk [vmem:[%s266 + $0x58] sm:$0xff] %vm795, %v754
          %808 = vst.msk [vmem:[%s266 + $0x60] sm:$0xff] %vm795, %v764
          %809 = vst.msk [vmem:[%s266 + $0x68] sm:$0xff] %vm795, %v774
          %810 = vst.msk [vmem:[%s266 + $0x70] sm:$0xff] %vm795, %v784
          %811 = vst.msk [vmem:[%s266 + $0x78] sm:$0xff] %vm795, %v794
          %v812 = vld [vmem:[%s224] sm:$0xff]
          %v813 = vld [vmem:[%s224 + $0x8] sm:$0xff]
          %v814 = vld [vmem:[%s224 + $0x10] sm:$0xff]
          %v815 = vld [vmem:[%s224 + $0x18] sm:$0xff]
          %v816 = vld [vmem:[%s224 + $0x20] sm:$0xff]
          %v817 = vld [vmem:[%s224 + $0x28] sm:$0xff]
          %v818 = vld [vmem:[%s224 + $0x30] sm:$0xff]
          %v819 = vld [vmem:[%s224 + $0x38] sm:$0xff]
          %v820 = vld [vmem:[%s224 + $0x40] sm:$0xff]
          %v821 = vld [vmem:[%s224 + $0x48] sm:$0xff]
          %v822 = vld [vmem:[%s224 + $0x50] sm:$0xff]
          %v823 = vld [vmem:[%s224 + $0x58] sm:$0xff]
          %v824 = vld [vmem:[%s224 + $0x60] sm:$0xff]
          %v825 = vld [vmem:[%s224 + $0x68] sm:$0xff]
          %v826 = vld [vmem:[%s224 + $0x70] sm:$0xff]
          %v827 = vld [vmem:[%s224 + $0x78] sm:$0xff]
          %v828 = vmul.f32 %v644, %v812
          %v829 = vmul.f32 %v654, %v813
          %v830 = vmul.f32 %v664, %v814
          %v831 = vmul.f32 %v674, %v815
          %v832 = vmul.f32 %v684, %v816
          %v833 = vmul.f32 %v694, %v817
          %v834 = vmul.f32 %v704, %v818
          %v835 = vmul.f32 %v714, %v819
          %v836 = vmul.f32 %v724, %v820
          %v837 = vmul.f32 %v734, %v821
          %v838 = vmul.f32 %v744, %v822
          %v839 = vmul.f32 %v754, %v823
          %v840 = vmul.f32 %v764, %v824
          %v841 = vmul.f32 %v774, %v825
          %v842 = vmul.f32 %v784, %v826
          %v843 = vmul.f32 %v794, %v827
          %v844 = vpack.c.bf16 %v828, %v828
          %v845 = vpack.c.bf16 %v829, %v829
          %v846 = vpack.c.bf16 %v830, %v830
          %v847 = vpack.c.bf16 %v831, %v831
          %v848 = vpack.c.bf16 %v832, %v832
          %v849 = vpack.c.bf16 %v833, %v833
          %v850 = vpack.c.bf16 %v834, %v834
          %v851 = vpack.c.bf16 %v835, %v835
          %v852 = vpack.c.bf16 %v836, %v836
          %v853 = vpack.c.bf16 %v837, %v837
          %v854 = vpack.c.bf16 %v838, %v838
          %v855 = vpack.c.bf16 %v839, %v839
          %v856 = vpack.c.bf16 %v840, %v840
          %v857 = vpack.c.bf16 %v841, %v841
          %v858 = vpack.c.bf16 %v842, %v842
          %v859 = vpack.c.bf16 %v843, %v843
          %860 = vst [vmem:[%s250] sm:$0xf] %v844
          %861 = vst [vmem:[%s250 + $0x4] sm:$0xf] %v845
          %862 = vst [vmem:[%s250 + $0x8] sm:$0xf] %v846
          %863 = vst [vmem:[%s250 + $0xc] sm:$0xf] %v847
          %864 = vst [vmem:[%s250 + $0x10] sm:$0xf] %v848
          %865 = vst [vmem:[%s250 + $0x14] sm:$0xf] %v849
          %866 = vst [vmem:[%s250 + $0x18] sm:$0xf] %v850
          %867 = vst [vmem:[%s250 + $0x1c] sm:$0xf] %v851
          %868 = vst [vmem:[%s250 + $0x20] sm:$0xf] %v852
          %869 = vst [vmem:[%s250 + $0x24] sm:$0xf] %v853
          %870 = vst [vmem:[%s250 + $0x28] sm:$0xf] %v854
          %871 = vst [vmem:[%s250 + $0x2c] sm:$0xf] %v855
          %872 = vst [vmem:[%s250 + $0x30] sm:$0xf] %v856
          %873 = vst [vmem:[%s250 + $0x34] sm:$0xf] %v857
          %874 = vst [vmem:[%s250 + $0x38] sm:$0xf] %v858
          %875 = vst [vmem:[%s250 + $0x3c] sm:$0xf] %v859
        $region44: #{tpu_custom_call.1} parent=27 // pred_fallthru
          _
        %s876 = sand.u32 %s98, 1
        %s877 = scalar_lea.sflag [#allocation5], %s876
        %s878 = sand.u32 %s98, 1
        %s879 = smul.addr %s878, 64
        %s880 = scalar_lea.vmem [#allocation8], %s879
        %s881 = smul.u32 16, %s28
        %p882 = scmp.lt.s32.totalorder %s881, 31
        %s883 = scalar_select %p882, %s881, 31
        %s884 = smul.addr %s883, 8
        %s885 = scalar_lea.vmem %s3, %s884
        // Predicated region
        $region45: #{tpu_custom_call.1} parent=27 // pred_check
          %p886 = pneg %p108
        $region46: #{tpu_custom_call.1} parent=27 // pred_check_branch
          %888 = sbr.rel (%p886) target = $region48
        $region47: #{tpu_custom_call.1} parent=27 // pred_region
          %s889 = smul.u32 16, %s28
          %891 = vsyncadd %s877, 0
          %s892 = smul.addr %s889, 4
          %s893 = scalar_lea.hbm %s2, %s892
          %s894 = sshll.u32 %s880, 4
          %s895 = int_to_ptr.vmem [resolvable:$true] %s894
          %s896 = sshll.u32 %s893, 4
          %s897 = int_to_ptr.hbm [resolvable:$true] %s896
          %902 = dma.vmem_to_hbm [thread:$0]  %s895, 1024, %s897, %s877, 64, 64, 4
        $region48: #{tpu_custom_call.1} parent=27 // pred_fallthru
          _
        // Predicated region
        $region49: #{tpu_custom_call.1} parent=27 // pred_check
          %p903 = pneg %p134
        $region50: #{tpu_custom_call.1} parent=27 // pred_check_branch
          %905 = sbr.rel (%p903) target = $region52
        $region51: #{tpu_custom_call.1} parent=27 // pred_region
          %s906 = smul.u32 16, %s28
        $region52: #{tpu_custom_call.1} parent=27 // pred_fallthru
          _
      $region28: #{tpu_custom_call.1} parent=5 // pred_fallthru
        _
      %p907 = scmp.le.s32.totalorder 2, %s19
      // Predicated region
      $region53: #{tpu_custom_call.1} parent=5 // pred_check
        %p908 = pneg %p907
      $region54: #{tpu_custom_call.1} parent=5 // pred_check_branch
        %910 = sbr.rel (%p908) target = $region56
      $region55: #{tpu_custom_call.1} parent=5 // pred_region
        %s911 = ssub.s32 %s19, 2
        // Predicated region
        $region57: #{tpu_custom_call.1} parent=55 // pred_check
          %p912 = pneg %p114
        $region58: #{tpu_custom_call.1} parent=55 // pred_check_branch
          %914 = sbr.rel (%p912) target = $region60
        $region59: #{tpu_custom_call.1} parent=55 // pred_region
          %s915 = sand.u32 %s99, 1
          %s916 = scalar_lea.sflag [#allocation5], %s915
          %s917 = sand.u32 %s99, 1
          %s918 = smul.addr %s917, 64
          %s919 = scalar_lea.vmem [#allocation8], %s918
          %921 = dma.done %s916, 1024
        $region60: #{tpu_custom_call.1} parent=55 // pred_fallthru
          _
        // Predicated region
        $region61: #{tpu_custom_call.1} parent=55 // pred_check
          %p922 = pneg %p140
        $region62: #{tpu_custom_call.1} parent=55 // pred_check_branch
          %924 = sbr.rel (%p922) target = $region64
        $region63: #{tpu_custom_call.1} parent=55 // pred_region
          %s925 = smul.u32 16, %s30
          %p926 = scmp.lt.s32.totalorder %s925, 31
          %s927 = scalar_select %p926, %s925, 31
          %s928 = smul.addr %s927, 8
          %s929 = scalar_lea.vmem %s3, %s928
        $region64: #{tpu_custom_call.1} parent=55 // pred_fallthru
          _
      $region56: #{tpu_custom_call.1} parent=5 // pred_fallthru
        _
    $region6: #{tpu_custom_call.1} parent=1 // loop_footer
      %s23 = sadd.s32 1, %s19
    $region7: #{tpu_custom_call.1} parent=1 // loop_footer_branch
      %18 = sbr.rel target = $region3
    $region8: #{tpu_custom_call.1} parent=1 // loop_exit
      _
    %930 = vsyncpa [#allocation4], 1
    %s931 = scalar_lea.sflag [#allocation4], 1
    %932 = vsyncpa %s931, 1
    %933 = vsyncpa [#allocation7], 1
    %s934 = scalar_lea.sflag [#allocation7], 1
    %935 = vsyncpa %s934, 1
    %936 = vsyncpa [#allocation5], 1
    %s937 = scalar_lea.sflag [#allocation5], 1
    %938 = vsyncpa %s937, 1

</llo_original>
